<compile_context>
chip_gen: v5e
topology: v5e:2x2
jax: 0.10.0
libtpu: 0.0.40
codegen_flags: <defaults>
</compile_context>

<pallas_src>
import jax
import jax.numpy as jnp
from jax.experimental import pallas as pl
from jax.experimental.pallas import tpu as pltpu

BN_EPS = 1e-5
_VMEM_LIMIT = 32 * 1024 * 1024      # fits scoped-VMEM defaults on v5e/v6e/v7x
_TM_TARGET = 1024                   # lane-tile target (multiple of 128)


def _round_up(x, m):
    return (x + m - 1) // m * m


def _stats_kernel(x_ref, w_ref, sum_ref, sq_ref):
    """Pass 1: accumulate per-channel sum / sum-of-squares of y = W @ relu(x)."""
    @pl.when(pl.program_id(0) == 0)
    def _():
        sum_ref[...] = jnp.zeros_like(sum_ref)
        sq_ref[...] = jnp.zeros_like(sq_ref)

    x = jnp.maximum(x_ref[...], 0.0)                                  # ReLU (VPU, lane-dense)
    y = jnp.dot(w_ref[...], x, preferred_element_type=jnp.float32)    # 1x1 conv == matmul (MXU), (Cout, tm)
    # NOTE: single-pass E[y^2]-E[y]^2 variance in f32; fine for BN-scale data,
    # switch to Welford/two-pass if mean^2 >> var in your regime.
    sum_ref[...] += jnp.sum(y, axis=1, keepdims=True)                 # lane reduce (XLU) -> (Cout, 1)
    sq_ref[...] += jnp.sum(y * y, axis=1, keepdims=True)


def _normalize_kernel(x_ref, w_ref, scale_ref, shift_ref, o_ref):
    """Pass 2: recompute y and apply folded BN affine (one FMA per element)."""
    x = jnp.maximum(x_ref[...], 0.0)
    y = jnp.dot(w_ref[...], x, preferred_element_type=jnp.float32)    # (Cout, tm)
    o_ref[...] = (y * scale_ref[...] + shift_ref[...]).astype(o_ref.dtype)


@jax.jit
def factorized_reduce(x, w1, w2, gamma, beta):
    """x: (N, Cin, H, W) NCHW; w1/w2: (Cout//2, Cin, 1, 1); gamma/beta: (Cout,)."""
    n, cin, h, w = x.shape
    c_half = w1.shape[0]
    cout = 2 * c_half

    # stride-2, kernel-size-1 conv samples even spatial positions.
    xs = x[:, :, ::2, ::2]                                    # (N, Cin, Ho, Wo)
    ho, wo = xs.shape[2], xs.shape[3]
    m = n * ho * wo

    # channel-major slab: channels on sublanes, N*Ho*Wo on lanes (lane-dense).
    xm = jnp.transpose(xs, (1, 0, 2, 3)).reshape(cin, m)      # (Cin, M)

    # pad M up to a tile multiple; zero columns add exactly 0 to sum/sumsq.
    tm = min(_TM_TARGET, _round_up(m, 128))
    m_pad = _round_up(m, tm)
    if m_pad != m:
        xm = jnp.pad(xm, ((0, 0), (0, m_pad - m)))
    num_tiles = m_pad // tm

    # cat([conv1, conv2], dim=1) == single matmul with concatenated weights.
    wk = jnp.concatenate([w1, w2], axis=0)[:, :, 0, 0]        # (Cout, Cin)

    # ---- pass 1: per-channel batch statistics (resident accumulator) -------
    ch_sum, ch_sq = pl.pallas_call(
        _stats_kernel,
        out_shape=(jax.ShapeDtypeStruct((cout, 1), jnp.float32),
                   jax.ShapeDtypeStruct((cout, 1), jnp.float32)),
        grid=(num_tiles,),
        in_specs=[
            pl.BlockSpec((cin, tm), lambda i: (0, i)),
            pl.BlockSpec((cout, cin), lambda i: (0, 0)),
        ],
        out_specs=(pl.BlockSpec((cout, 1), lambda i: (0, 0)),
                   pl.BlockSpec((cout, 1), lambda i: (0, 0))),
        compiler_params=pltpu.CompilerParams(
            dimension_semantics=("arbitrary",),
            vmem_limit_bytes=_VMEM_LIMIT),
    )(xm, wk)

    # Fold BN into per-channel scale/shift once (hoisted out of the tile loop):
    #   bn(y) = gamma*(y-mean)*rsqrt(var+eps)+beta = y*scale + shift
    inv_m = 1.0 / m                                           # true element count (ignores padding)
    mean = ch_sum[:, 0] * inv_m
    var = jnp.maximum(ch_sq[:, 0] * inv_m - mean * mean, 0.0)  # biased var (PyTorch BN forward)
    scale = gamma * jax.lax.rsqrt(var + BN_EPS)
    shift = beta - mean * scale
    scale2 = scale.reshape(cout, 1).astype(jnp.float32)
    shift2 = shift.reshape(cout, 1).astype(jnp.float32)

    # ---- pass 2: normalize (parallel over M tiles, lane-dense stores) ------
    out_slab = pl.pallas_call(
        _normalize_kernel,
        out_shape=jax.ShapeDtypeStruct((cout, m_pad), jnp.float32),
        grid=(num_tiles,),
        in_specs=[
            pl.BlockSpec((cin, tm), lambda i: (0, i)),
            pl.BlockSpec((cout, cin), lambda i: (0, 0)),
            pl.BlockSpec((cout, 1), lambda i: (0, 0)),
            pl.BlockSpec((cout, 1), lambda i: (0, 0)),
        ],
        out_specs=pl.BlockSpec((cout, tm), lambda i: (0, i)),
        compiler_params=pltpu.CompilerParams(
            dimension_semantics=("parallel",),
            vmem_limit_bytes=_VMEM_LIMIT),
    )(xm, wk, scale2, shift2)

    # back to NCHW
    out = out_slab[:, :m].reshape(cout, n, ho, wo).transpose(1, 0, 2, 3)
    return out


def _reference(x, w1, w2, gamma, beta):
    """Pure-JAX reference of the PyTorch forward (training-mode BN)."""
    xr = jnp.maximum(x, 0.0)
    xs = xr[:, :, ::2, ::2]                                   # (N, Cin, Ho, Wo)
    w_cat = jnp.concatenate([w1, w2], axis=0)[:, :, 0, 0]     # (Cout, Cin)
    y = jnp.einsum("oc,nchw->nohw", w_cat, xs)                # (N, Cout, Ho, Wo)
    mean = jnp.mean(y, axis=(0, 2, 3), keepdims=True)
    var = jnp.mean((y - mean) ** 2, axis=(0, 2, 3), keepdims=True)
    y_hat = (y - mean) * jax.lax.rsqrt(var + BN_EPS)
    return y_hat * gamma.reshape(1, -1, 1, 1) + beta.reshape(1, -1, 1, 1)


if __name__ == "__main__":
    # Small shapes consistent with the module: batch=2, in_channels=4,
    # out_channels=8, spatial 16x16.
    N, CIN, COUT, H, W = 2, 4, 8, 16, 16

    key = jax.random.PRNGKey(0)
    kx, kw1, kw2, kg, kb = jax.random.split(key, 5)

    x = jax.random.normal(kx, (N, CIN, H, W), dtype=jnp.float32)
    # Conv2d(in, out//2, kernel_size=1, stride=2, bias=False) weights.
    w1 = jax.random.normal(kw1, (COUT // 2, CIN, 1, 1), dtype=jnp.float32) * 0.1
    w2 = jax.random.normal(kw2, (COUT // 2, CIN, 1, 1), dtype=jnp.float32) * 0.1
    # BatchNorm affine params (deterministic synthetic init).
    gamma = 1.0 + 0.1 * jax.random.normal(kg, (COUT,), dtype=jnp.float32)
    beta = 0.1 * jax.random.normal(kb, (COUT,), dtype=jnp.float32)

    out = factorized_reduce(x, w1, w2, gamma, beta)
    out = jax.block_until_ready(out)

    ref = _reference(x, w1, w2, gamma, beta)
    assert out.shape == (N, COUT, H // 2, W // 2), out.shape
    assert jnp.allclose(out, ref, atol=1e-4, rtol=1e-4), float(jnp.max(jnp.abs(out - ref)))

    print("KERNEL_OK")
</pallas_src>

<mosaic_0001>
module attributes {stable_mosaic.version = 11 : i64} {
  func.func @_stats_kernel(%arg0: i32, %arg1: memref<4x128xf32, #tpu.memory_space<vmem>>, %arg2: memref<8x4xf32, #tpu.memory_space<vmem>>, %arg3: memref<8x1xf32, #tpu.memory_space<vmem>>, %arg4: memref<8x1xf32, #tpu.memory_space<vmem>>) attributes {dimension_semantics = [#tpu.dimension_semantics<arbitrary>], iteration_bounds = array<i64: 1>, scalar_prefetch = 0 : i64, scratch_operands = 0 : i64, tpu.core_type = #tpu.core_type<tc>, window_params = [{transform_indices = @transform_0, window_bounds = array<i64: 4, 128>}, {pipeline_mode = #tpu.pipeline_mode<synchronous>, transform_indices = @transform_1, window_bounds = array<i64: 8, 4>}, {pipeline_mode = #tpu.pipeline_mode<synchronous>, transform_indices = @transform_2, window_bounds = array<i64: 8, 1>}, {pipeline_mode = #tpu.pipeline_mode<synchronous>, transform_indices = @transform_3, window_bounds = array<i64: 8, 1>}]} {
    %c0_i32 = arith.constant 0 : i32
    %0 = arith.cmpi eq, %arg0, %c0_i32 : i32
    %1 = arith.extui %0 : i1 to i32
    %c0_i32_0 = arith.constant 0 : i32
    %2 = arith.cmpi ne, %1, %c0_i32_0 : i32
    scf.if %2 {
      %cst_15 = arith.constant 0.000000e+00 : f32
      %19 = vector.broadcast %cst_15 : f32 to vector<8x1xf32>
      %c0_16 = arith.constant 0 : index
      %c0_17 = arith.constant 0 : index
      %20 = vector.load %arg3[%c0_16, %c0_17] : memref<8x1xf32, #tpu.memory_space<vmem>>, vector<8x1xf32>
      tpu.vector_store %arg3[%c0_16, %c0_17], %19 {strides = array<i32>} : memref<8x1xf32, #tpu.memory_space<vmem>>, vector<8x1xf32>,
      %cst_18 = arith.constant 0.000000e+00 : f32
      %21 = vector.broadcast %cst_18 : f32 to vector<8x1xf32>
      %c0_19 = arith.constant 0 : index
      %c0_20 = arith.constant 0 : index
      %22 = vector.load %arg4[%c0_19, %c0_20] : memref<8x1xf32, #tpu.memory_space<vmem>>, vector<8x1xf32>
      tpu.vector_store %arg4[%c0_19, %c0_20], %21 {strides = array<i32>} : memref<8x1xf32, #tpu.memory_space<vmem>>, vector<8x1xf32>,
    } else {
    }
    %c0 = arith.constant 0 : index
    %c0_1 = arith.constant 0 : index
    %3 = vector.load %arg1[%c0, %c0_1] : memref<4x128xf32, #tpu.memory_space<vmem>>, vector<4x128xf32>
    %cst = arith.constant 0.000000e+00 : f32
    %4 = vector.broadcast %cst : f32 to vector<4x128xf32>
    %5 = arith.maximumf %3, %4 : vector<4x128xf32>
    %c0_2 = arith.constant 0 : index
    %c0_3 = arith.constant 0 : index
    %6 = vector.load %arg2[%c0_2, %c0_3] : memref<8x4xf32, #tpu.memory_space<vmem>>, vector<8x4xf32>
    %cst_4 = arith.constant dense<0.000000e+00> : vector<8x128xf32>
    %7 = tpu.matmul %6, %5, %cst_4 {dimension_numbers = #tpu.dot_dimension_numbers<[1], [0], [0], [1], [0, 0, 1, 1], [], []>} : vector<8x4xf32>, vector<4x128xf32>, vector<8x128xf32> -> vector<8x128xf32>
    %c0_5 = arith.constant 0 : index
    %c0_6 = arith.constant 0 : index
    %8 = vector.load %arg3[%c0_5, %c0_6] : memref<8x1xf32, #tpu.memory_space<vmem>>, vector<8x1xf32>
    %cst_7 = arith.constant dense<0.000000e+00> : vector<8xf32>
    %9 = vector.multi_reduction <add>, %7, %cst_7 [1] : vector<8x128xf32> to vector<8xf32>
    %10 = vector.shape_cast %9 : vector<8xf32> to vector<8x1xf32>
    %11 = arith.addf %8, %10 : vector<8x1xf32>
    %c0_8 = arith.constant 0 : index
    %c0_9 = arith.constant 0 : index
    %12 = vector.load %arg3[%c0_8, %c0_9] : memref<8x1xf32, #tpu.memory_space<vmem>>, vector<8x1xf32>
    tpu.vector_store %arg3[%c0_8, %c0_9], %11 {strides = array<i32>} : memref<8x1xf32, #tpu.memory_space<vmem>>, vector<8x1xf32>,
    %c0_10 = arith.constant 0 : index
    %c0_11 = arith.constant 0 : index
    %13 = vector.load %arg4[%c0_10, %c0_11] : memref<8x1xf32, #tpu.memory_space<vmem>>, vector<8x1xf32>
    %14 = arith.mulf %7, %7 : vector<8x128xf32>
    %cst_12 = arith.constant dense<0.000000e+00> : vector<8xf32>
    %15 = vector.multi_reduction <add>, %14, %cst_12 [1] : vector<8x128xf32> to vector<8xf32>
    %16 = vector.shape_cast %15 : vector<8xf32> to vector<8x1xf32>
    %17 = arith.addf %13, %16 : vector<8x1xf32>
    %c0_13 = arith.constant 0 : index
    %c0_14 = arith.constant 0 : index
    %18 = vector.load %arg4[%c0_13, %c0_14] : memref<8x1xf32, #tpu.memory_space<vmem>>, vector<8x1xf32>
    tpu.vector_store %arg4[%c0_13, %c0_14], %17 {strides = array<i32>} : memref<8x1xf32, #tpu.memory_space<vmem>>, vector<8x1xf32>,
    return
  }
  func.func @transform_0(%arg0: i32) -> (i32, i32) {
    %c0_i32 = arith.constant 0 : i32
    %c0_i32_0 = arith.constant 0 : i32
    return %c0_i32, %arg0 : i32, i32
  }
  func.func @transform_1(%arg0: i32) -> (i32, i32) {
    %c0_i32 = arith.constant 0 : i32
    %c0_i32_0 = arith.constant 0 : i32
    %c0_i32_1 = arith.constant 0 : i32
    return %c0_i32, %c0_i32_0 : i32, i32
  }
  func.func @transform_2(%arg0: i32) -> (i32, i32) {
    %c0_i32 = arith.constant 0 : i32
    %c0_i32_0 = arith.constant 0 : i32
    %c0_i32_1 = arith.constant 0 : i32
    return %c0_i32, %c0_i32_0 : i32, i32
  }
  func.func @transform_3(%arg0: i32) -> (i32, i32) {
    %c0_i32 = arith.constant 0 : i32
    %c0_i32_0 = arith.constant 0 : i32
    %c0_i32_1 = arith.constant 0 : i32
    return %c0_i32, %c0_i32_0 : i32, i32
  }
}

module attributes {stable_mosaic.version = 11 : i64} {
  func.func @_normalize_kernel(%arg0: i32, %arg1: memref<4x128xf32, #tpu.memory_space<vmem>>, %arg2: memref<8x4xf32, #tpu.memory_space<vmem>>, %arg3: memref<8x1xf32, #tpu.memory_space<vmem>>, %arg4: memref<8x1xf32, #tpu.memory_space<vmem>>, %arg5: memref<8x128xf32, #tpu.memory_space<vmem>>) attributes {dimension_semantics = [#tpu.dimension_semantics<parallel>], iteration_bounds = array<i64: 1>, scalar_prefetch = 0 : i64, scratch_operands = 0 : i64, tpu.core_type = #tpu.core_type<tc>, window_params = [{transform_indices = @transform_0, window_bounds = array<i64: 4, 128>}, {pipeline_mode = #tpu.pipeline_mode<synchronous>, transform_indices = @transform_1, window_bounds = array<i64: 8, 4>}, {pipeline_mode = #tpu.pipeline_mode<synchronous>, transform_indices = @transform_2, window_bounds = array<i64: 8, 1>}, {pipeline_mode = #tpu.pipeline_mode<synchronous>, transform_indices = @transform_3, window_bounds = array<i64: 8, 1>}, {transform_indices = @transform_4, window_bounds = array<i64: 8, 128>}]} {
    %c0 = arith.constant 0 : index
    %c0_0 = arith.constant 0 : index
    %0 = vector.load %arg1[%c0, %c0_0] : memref<4x128xf32, #tpu.memory_space<vmem>>, vector<4x128xf32>
    %cst = arith.constant 0.000000e+00 : f32
    %1 = vector.broadcast %cst : f32 to vector<4x128xf32>
    %2 = arith.maximumf %0, %1 : vector<4x128xf32>
    %c0_1 = arith.constant 0 : index
    %c0_2 = arith.constant 0 : index
    %3 = vector.load %arg2[%c0_1, %c0_2] : memref<8x4xf32, #tpu.memory_space<vmem>>, vector<8x4xf32>
    %cst_3 = arith.constant dense<0.000000e+00> : vector<8x128xf32>
    %4 = tpu.matmul %3, %2, %cst_3 {dimension_numbers = #tpu.dot_dimension_numbers<[1], [0], [0], [1], [0, 0, 1, 1], [], []>} : vector<8x4xf32>, vector<4x128xf32>, vector<8x128xf32> -> vector<8x128xf32>
    %c0_4 = arith.constant 0 : index
    %c0_5 = arith.constant 0 : index
    %5 = vector.load %arg3[%c0_4, %c0_5] : memref<8x1xf32, #tpu.memory_space<vmem>>, vector<8x1xf32>
    %6 = vector.broadcast %5 : vector<8x1xf32> to vector<8x128xf32>
    %7 = arith.mulf %4, %6 : vector<8x128xf32>
    %c0_6 = arith.constant 0 : index
    %c0_7 = arith.constant 0 : index
    %8 = vector.load %arg4[%c0_6, %c0_7] : memref<8x1xf32, #tpu.memory_space<vmem>>, vector<8x1xf32>
    %9 = vector.broadcast %8 : vector<8x1xf32> to vector<8x128xf32>
    %10 = arith.addf %7, %9 : vector<8x128xf32>
    %c0_8 = arith.constant 0 : index
    %c0_9 = arith.constant 0 : index
    %11 = vector.load %arg5[%c0_8, %c0_9] : memref<8x128xf32, #tpu.memory_space<vmem>>, vector<8x128xf32>
    tpu.vector_store %arg5[%c0_8, %c0_9], %10 {strides = array<i32>} : memref<8x128xf32, #tpu.memory_space<vmem>>, vector<8x128xf32>,
    return
  }
  func.func @transform_0(%arg0: i32) -> (i32, i32) {
    %c0_i32 = arith.constant 0 : i32
    %c0_i32_0 = arith.constant 0 : i32
    return %c0_i32, %arg0 : i32, i32
  }
  func.func @transform_1(%arg0: i32) -> (i32, i32) {
    %c0_i32 = arith.constant 0 : i32
    %c0_i32_0 = arith.constant 0 : i32
    %c0_i32_1 = arith.constant 0 : i32
    return %c0_i32, %c0_i32_0 : i32, i32
  }
  func.func @transform_2(%arg0: i32) -> (i32, i32) {
    %c0_i32 = arith.constant 0 : i32
    %c0_i32_0 = arith.constant 0 : i32
    %c0_i32_1 = arith.constant 0 : i32
    return %c0_i32, %c0_i32_0 : i32, i32
  }
  func.func @transform_3(%arg0: i32) -> (i32, i32) {
    %c0_i32 = arith.constant 0 : i32
    %c0_i32_0 = arith.constant 0 : i32
    %c0_i32_1 = arith.constant 0 : i32
    return %c0_i32, %c0_i32_0 : i32, i32
  }
  func.func @transform_4(%arg0: i32) -> (i32, i32) {
    %c0_i32 = arith.constant 0 : i32
    %c0_i32_0 = arith.constant 0 : i32
    return %c0_i32, %arg0 : i32, i32
  }
}

</mosaic_0001>

<llo_original>
// kernel: factorized_reduce.2
$region0: #{factorized_reduce.2}
  #allocation0 [shape = 'u32[]', space=smem, size = 0x4, offset = 0x4, fixed_abs, tag = 'smem constant byte address 0x4 - core index']
  #allocation1 [shape = 'u32[72,128]{1,0:T(1,128)}', space=vmem, size = 0x9000, scoped, tag = 'internal scratch']
  %s0 = inlined_call_operand.vmem [shape: f32[4,128], index: 0, kind: input, shape index: {}]
  %s1 = inlined_call_operand.vmem [shape: f32[8,4], index: 1, kind: input, shape index: {}]
  %s2 = inlined_call_operand.vmem [shape: f32[8,1], index: 2, kind: output, shape index: {0}]
  %s3 = inlined_call_operand.vmem [shape: f32[8,1], index: 3, kind: output, shape index: {1}]
  %4 = xla_tuple %s2, %s3
  %s5 = sld [smem:[#allocation0]]
  $region30: #{factorized_reduce.2} parent=0
    _
  %s7 = ssub.s32 1, %s5
  %s8 = scalar_select 0, %s7, %s5
  // Predicated region
  $region2: #{factorized_reduce.2} parent=0 // pred_check
    _
  $region3: #{factorized_reduce.2} parent=0 // pred_check_branch
    %10 = sbr.rel (0) target = $region5
  $region4: #{factorized_reduce.2} parent=0 // pred_region
    _
  $region5: #{factorized_reduce.2} parent=0 // pred_fallthru
    _
  // Predicated region
  $region6: #{factorized_reduce.2} parent=0 // pred_check
    _
  $region7: #{factorized_reduce.2} parent=0 // pred_check_branch
    %12 = sbr.rel (0) target = $region9
  $region8: #{factorized_reduce.2} parent=0 // pred_region
    _
  $region9: #{factorized_reduce.2} parent=0 // pred_fallthru
    _
  %p13 = scmp.eq.s32.totalorder 0, 0
  // Predicated region
  $region10: #{factorized_reduce.2} parent=0 // pred_check
    %p14 = pneg %p13
  $region11: #{factorized_reduce.2} parent=0 // pred_check_branch
    %16 = sbr.rel (%p14) target = $region13
  $region12: #{factorized_reduce.2} parent=0 // pred_region
    %vm17 = vcmask 7168
    %18 = vst.msk [vmem:[%s2] sm:$0xff] %vm17, 0.0
    %19 = vst.msk [vmem:[%s3] sm:$0xff] %vm17, 0.0
  $region13: #{factorized_reduce.2} parent=0 // pred_fallthru
    _
  %v20 = vld [vmem:[%s0] sm:$0xf]
  %v21 = vmax.f32 %v20, 0.0
  %v22 = vld [vmem:[%s1] sm:$0xff]
  %vm23 = vcmask 31744
  %v25 = vsel %vm23, %v22, 0
  %vm27 = vcmask 1043456
  %v29 = vsel %vm27, %v21, 0
  %31 = vmatpush.msra.mxu0 0.0
  %32 = vmatpush.msra.mxu0 0.0
  %33 = vmatpush.msra.mxu0 0.0
  %34 = vmatpush.msra.mxu0 0.0
  %35 = vmatpush.msra.mxu0 0.0
  %36 = vmatpush.msra.mxu0 0.0
  %37 = vmatpush.msra.mxu0 0.0
  %38 = vmatpush.msra.mxu0 0.0
  %39 = vmatpush.msra.mxu0 0.0
  %40 = vmatpush.msra.mxu0 0.0
  %41 = vmatpush.msra.mxu0 0.0
  %42 = vmatpush.msra.mxu0 0.0
  %43 = vmatpush.msra.mxu0 0.0
  %44 = vmatpush.msra.mxu0 0.0
  %45 = vmatpush.msra.mxu0 0.0
  %46 = vmatpush.msra.mxu0 %v29
  %47 = vmatmul.f32.gmra.mxu0 %v25
  %v48 = vpop.f32.mrf.mxu0
  %v49 = vadd.f32 0.0, %v48
  %50 = vdwg.mxu0
  %v51 = vld [vmem:[%s2] sm:$0xff]
  %52 = vadd.xlane.f32.xlu0 %v49
  %v53 = vpop.xlane.xlu0 %52
  %v54 = vadd.f32 %v51, %v53
  %vm55 = vcmask 7168
  %56 = vst.msk [vmem:[%s2] sm:$0xff] %vm55, %v54
  %v57 = vld [vmem:[%s3] sm:$0xff]
  %v58 = vmul.f32 %v49, %v49
  %59 = vadd.xlane.f32.xlu0 %v58
  %v60 = vpop.xlane.xlu0 %59
  %v61 = vadd.f32 %v57, %v60
  %62 = vst.msk [vmem:[%s3] sm:$0xff] %vm55, %v61
  // Predicated region
  $region14: #{factorized_reduce.2} parent=0 // pred_check
    _
  $region15: #{factorized_reduce.2} parent=0 // pred_check_branch
    %64 = sbr.rel (0) target = $region17
  $region16: #{factorized_reduce.2} parent=0 // pred_region
    _
  $region17: #{factorized_reduce.2} parent=0 // pred_fallthru
    _
  // Predicated region
  $region18: #{factorized_reduce.2} parent=0 // pred_check
    _
  $region19: #{factorized_reduce.2} parent=0 // pred_check_branch
    %66 = sbr.rel (0) target = $region21
  $region20: #{factorized_reduce.2} parent=0 // pred_region
    _
  $region21: #{factorized_reduce.2} parent=0 // pred_fallthru
    _
  // Predicated region
  $region22: #{factorized_reduce.2} parent=0 // pred_check
    _
  $region23: #{factorized_reduce.2} parent=0 // pred_check_branch
    %68 = sbr.rel (0) target = $region25
  $region24: #{factorized_reduce.2} parent=0 // pred_region
    _
  $region25: #{factorized_reduce.2} parent=0 // pred_fallthru
    _
  // Predicated region
  $region26: #{factorized_reduce.2} parent=0 // pred_check
    _
  $region27: #{factorized_reduce.2} parent=0 // pred_check_branch
    %70 = sbr.rel (0) target = $region29
  $region28: #{factorized_reduce.2} parent=0 // pred_region
    _
  $region29: #{factorized_reduce.2} parent=0 // pred_fallthru
    _

// kernel: factorized_reduce.3
$region0: #{factorized_reduce.3}
  #allocation0 [shape = 'u32[]', space=smem, size = 0x4, offset = 0x4, fixed_abs, tag = 'smem constant byte address 0x4 - core index']
  #allocation1 [shape = 'u32[72,128]{1,0:T(1,128)}', space=vmem, size = 0x9000, scoped, tag = 'internal scratch']
  %s0 = inlined_call_operand.vmem [shape: f32[4,128], index: 0, kind: input, shape index: {}]
  %s1 = inlined_call_operand.vmem [shape: f32[8,4], index: 1, kind: input, shape index: {}]
  %s2 = inlined_call_operand.vmem [shape: f32[8,1], index: 2, kind: input, shape index: {}]
  %s3 = inlined_call_operand.vmem [shape: f32[8,1], index: 3, kind: input, shape index: {}]
  %s4 = inlined_call_operand.vmem [shape: f32[8,128], index: 4, kind: output, shape index: {}]
  %s5 = sld [smem:[#allocation0]]
  $region26: #{factorized_reduce.3} parent=0
    _
  %s7 = ssub.s32 1, %s5
  %s8 = scalar_select 0, %s7, %s5
  // Predicated region
  $region2: #{factorized_reduce.3} parent=0 // pred_check
    _
  $region3: #{factorized_reduce.3} parent=0 // pred_check_branch
    %10 = sbr.rel (0) target = $region5
  $region4: #{factorized_reduce.3} parent=0 // pred_region
    _
  $region5: #{factorized_reduce.3} parent=0 // pred_fallthru
    _
  // Predicated region
  $region6: #{factorized_reduce.3} parent=0 // pred_check
    _
  $region7: #{factorized_reduce.3} parent=0 // pred_check_branch
    %12 = sbr.rel (0) target = $region9
  $region8: #{factorized_reduce.3} parent=0 // pred_region
    _
  $region9: #{factorized_reduce.3} parent=0 // pred_fallthru
    _
  // Predicated region
  $region10: #{factorized_reduce.3} parent=0 // pred_check
    _
  $region11: #{factorized_reduce.3} parent=0 // pred_check_branch
    %14 = sbr.rel (0) target = $region13
  $region12: #{factorized_reduce.3} parent=0 // pred_region
    _
  $region13: #{factorized_reduce.3} parent=0 // pred_fallthru
    _
  // Predicated region
  $region14: #{factorized_reduce.3} parent=0 // pred_check
    _
  $region15: #{factorized_reduce.3} parent=0 // pred_check_branch
    %16 = sbr.rel (0) target = $region17
  $region16: #{factorized_reduce.3} parent=0 // pred_region
    _
  $region17: #{factorized_reduce.3} parent=0 // pred_fallthru
    _
  %v17 = vld [vmem:[%s0] sm:$0xf]
  %v18 = vmax.f32 %v17, 0.0
  %v19 = vld [vmem:[%s1] sm:$0xff]
  %vm20 = vcmask 31744
  %v22 = vsel %vm20, %v19, 0
  %vm24 = vcmask 1043456
  %v26 = vsel %vm24, %v18, 0
  %28 = vmatpush.msra.mxu0 0.0
  %29 = vmatpush.msra.mxu0 0.0
  %30 = vmatpush.msra.mxu0 0.0
  %31 = vmatpush.msra.mxu0 0.0
  %32 = vmatpush.msra.mxu0 0.0
  %33 = vmatpush.msra.mxu0 0.0
  %34 = vmatpush.msra.mxu0 0.0
  %35 = vmatpush.msra.mxu0 0.0
  %36 = vmatpush.msra.mxu0 0.0
  %37 = vmatpush.msra.mxu0 0.0
  %38 = vmatpush.msra.mxu0 0.0
  %39 = vmatpush.msra.mxu0 0.0
  %40 = vmatpush.msra.mxu0 0.0
  %41 = vmatpush.msra.mxu0 0.0
  %42 = vmatpush.msra.mxu0 0.0
  %43 = vmatpush.msra.mxu0 %v26
  %44 = vmatmul.f32.gmra.mxu0 %v22
  %v45 = vpop.f32.mrf.mxu0
  %v46 = vadd.f32 0.0, %v45
  %47 = vdwg.mxu0
  %v48 = vld [vmem:[%s2] sm:$0xff]
  %50 = vset.pattern.permute.xlu0 0
  %51 = vperm.xlu0 %50, %v48
  %v52 = vpop.permute.xlu0 %51
  %v54 = vmul.f32 %v46, %v52
  %v55 = vld [vmem:[%s3] sm:$0xff]
  %57 = vset.pattern.permute.xlu0 0
  %58 = vperm.xlu0 %57, %v55
  %v59 = vpop.permute.xlu0 %58
  %v61 = vadd.f32 %v54, %v59
  %62 = vst [vmem:[%s4] sm:$0xff] %v61
  // Predicated region
  $region18: #{factorized_reduce.3} parent=0 // pred_check
    _
  $region19: #{factorized_reduce.3} parent=0 // pred_check_branch
    %64 = sbr.rel (0) target = $region21
  $region20: #{factorized_reduce.3} parent=0 // pred_region
    _
  $region21: #{factorized_reduce.3} parent=0 // pred_fallthru
    _
  // Predicated region
  $region22: #{factorized_reduce.3} parent=0 // pred_check
    _
  $region23: #{factorized_reduce.3} parent=0 // pred_check_branch
    %66 = sbr.rel (0) target = $region25
  $region24: #{factorized_reduce.3} parent=0 // pred_region
    _
  $region25: #{factorized_reduce.3} parent=0 // pred_fallthru
    _

</llo_original>
